<compile_context>
chip_gen: v7x
topology: tpu7x:2x2x1
jax: 0.10.0
libtpu: 0.0.40
codegen_flags: <defaults>
</compile_context>

<pallas_src>
import jax
import jax.numpy as jnp
from jax.experimental import pallas as pl
from jax.experimental.pallas import tpu as pltpu


def _round_up(x, m):
    return ((x + m - 1) // m) * m


def _pick_tile(dim, candidates, min_tiles=1):
    """Largest candidate tile that divides `dim` and leaves >= min_tiles tiles;
    falls back to the largest dividing candidate, then to `dim` itself."""
    for c in candidates:
        if c <= dim and dim % c == 0 and dim // c >= min_tiles:
            return c
    for c in candidates:
        if c <= dim and dim % c == 0:
            return c
    return dim


# Explicit scoped-VMEM limit: well above the working set (a few MiB) and safe
# on v5e / v6e (128 MiB physical VMEM) and v7x (64 MiB per TensorCore).
_VMEM_LIMIT = 32 * 1024 * 1024


# ----------------------------- Pallas kernels ------------------------------

def _mlp_forward_kernel(x_ref, w1_ref, b1_ref, w2_ref, b2_ref, out_ref):
    """F_mean = tanh(X @ W1 + b1) @ W2 + b2 for one batch tile (weights resident)."""
    h = jnp.tanh(
        jnp.dot(x_ref[...], w1_ref[...], preferred_element_type=jnp.float32)
        + b1_ref[...])
    out_ref[...] = (
        jnp.dot(h, w2_ref[...], preferred_element_type=jnp.float32) + b2_ref[...]
    ).astype(out_ref.dtype)


def _matmul_kernel(scale_ref, a_ref, b_ref, o_ref, acc_ref):
    """K-tiled  O = scale * (A @ B)  with an f32 VMEM accumulator (scale in SMEM)."""
    k = pl.program_id(2)

    @pl.when(k == 0)
    def _():
        acc_ref[...] = jnp.zeros_like(acc_ref)

    acc_ref[...] += jnp.dot(a_ref[...], b_ref[...],
                            preferred_element_type=jnp.float32)

    @pl.when(k == pl.num_programs(2) - 1)
    def _():
        o_ref[...] = (scale_ref[0] * acc_ref[...]).astype(o_ref.dtype)


def _fvar_kernel(var_ref, jx_ref, g_ref, amat_ref, out_ref, acc_ref):
    """Per block of TN = 128 samples (grid axis 0, parallel) and P-tile kb
    (grid axis 1, last, arbitrary):

        acc[a*A + b, :] += sum_k Jx[a, :, k] * Jx[b, :, k]        (= Kx_diag / var)

    and at the last P-tile, with G = Jx Jz^T resident over kb and the
    (var^2 * A) matrix resident in VMEM, the fused quadratic term:

        Hq_a = G[a] @ (var^2 * A)                                  (MXU dot)
        Fvar[a*A + b, :] = var * acc[a*A + b, :] - sum_l Hq_a[:, l] * G[b][:, l]

    All slices are dense (TN, tk) / (TN, Mp) tiles (leading-axis indexing);
    the output is a lane-dense (A*A, TN) slab with TN = 128 on the lane axis.
    """
    kb = pl.program_id(1)
    A = jx_ref.shape[0]

    @pl.when(kb == 0)
    def _():
        acc_ref[...] = jnp.zeros_like(acc_ref)

    # Kx_diag accumulation: VPU multiply + XLU lane reduce, symmetric in (a, b).
    for a in range(A):
        for b in range(a, A):
            s = jnp.sum(jx_ref[a] * jx_ref[b], axis=-1)            # (TN,)
            acc_ref[a * A + b, :] += s
            if b != a:
                acc_ref[b * A + a, :] += s

    @pl.when(kb == pl.num_programs(1) - 1)
    def _():
        var = var_ref[0]
        for a in range(A):
            # Fused Hq = G_a @ (var^2 * A): per-channel MXU dot, A resident.
            ha = jnp.dot(g_ref[a], amat_ref[...],
                         preferred_element_type=jnp.float32)        # (TN, Mp)
            for b in range(A):
                quad = jnp.sum(ha * g_ref[b], axis=-1)              # (TN,)
                out_ref[a * A + b, :] = var * acc_ref[a * A + b, :] - quad


# ------------------------------- wrappers -----------------------------------

def mlp_forward_pallas(X, W1, b1, W2, b2):
    """Batch-tiled MLP forward; W1/W2/biases stay resident via constant index_map."""
    N, D = X.shape
    Hd = W1.shape[1]
    O = W2.shape[1]
    tb = 128 if N >= 128 else _round_up(N, 8)
    Nb = _round_up(N, tb)
    Xp = jnp.zeros((Nb, D), jnp.float32).at[:N].set(X)
    out = pl.pallas_call(
        _mlp_forward_kernel,
        out_shape=jax.ShapeDtypeStruct((Nb, O), jnp.float32),
        grid=(Nb // tb,),
        in_specs=[
            pl.BlockSpec((tb, D), lambda i: (i, 0)),
            pl.BlockSpec((D, Hd), lambda i: (0, 0)),
            pl.BlockSpec((1, Hd), lambda i: (0, 0)),
            pl.BlockSpec((Hd, O), lambda i: (0, 0)),
            pl.BlockSpec((1, O), lambda i: (0, 0)),
        ],
        out_specs=pl.BlockSpec((tb, O), lambda i: (i, 0)),
        compiler_params=pltpu.CompilerParams(
            dimension_semantics=("parallel",),
            vmem_limit_bytes=_VMEM_LIMIT),
    )(Xp, W1, b1.reshape(1, -1), W2, b2.reshape(1, -1))
    return out[:N]


def matmul_pallas(a, b, scale):
    """Tiled  scale * (a @ b)  on 128-aligned f32 operands, K axis last/arbitrary.
    Output tiles up to 256x256 (MXU-native on v6e/v7x); M axis prefers >= 2 tiles
    so both v7x TensorCores get work."""
    Mr, K = a.shape
    K2, Nc = b.shape
    assert K == K2
    tm = _pick_tile(Mr, (256, 128), min_tiles=2)
    tn = _pick_tile(Nc, (256, 128))
    tk = _pick_tile(K, (1024, 512, 256, 128))
    assert Mr % tm == 0 and Nc % tn == 0 and K % tk == 0
    scale_arr = jnp.asarray(scale, jnp.float32).reshape(1)
    return pl.pallas_call(
        _matmul_kernel,
        out_shape=jax.ShapeDtypeStruct((Mr, Nc), jnp.float32),
        grid=(Mr // tm, Nc // tn, K // tk),
        in_specs=[
            pl.BlockSpec(memory_space=pltpu.MemorySpace.SMEM),   # epilogue scale
            pl.BlockSpec((tm, tk), lambda i, j, k: (i, k)),
            pl.BlockSpec((tk, tn), lambda i, j, k: (k, j)),
        ],
        out_specs=pl.BlockSpec((tm, tn), lambda i, j, k: (i, j)),
        scratch_shapes=[pltpu.VMEM((tm, tn), jnp.float32)],
        compiler_params=pltpu.CompilerParams(
            dimension_semantics=("parallel", "parallel", "arbitrary"),
            vmem_limit_bytes=_VMEM_LIMIT),
    )(scale_arr, a, b)


def fvar_pallas(var, Jx3, G3, A_scaled):
    """Fvar in lane-dense layout (A*A, Np).  Jx3 is channel-major (A, Np, Pp),
    G3 is (A, Np, Mp), A_scaled is (Mp, Mp) with var^2 folded in (resident in
    VMEM).  TN = 128 samples per grid step; P-reduction axis last; Hq fused."""
    A, Np, Pp = Jx3.shape
    Mp = G3.shape[-1]
    TN = 128
    tk = _pick_tile(Pp, (512, 256, 128))
    assert Np % TN == 0 and Pp % tk == 0 and Mp % 128 == 0
    var_arr = jnp.asarray(var, jnp.float32).reshape(1)
    return pl.pallas_call(
        _fvar_kernel,
        out_shape=jax.ShapeDtypeStruct((A * A, Np), jnp.float32),
        grid=(Np // TN, Pp // tk),
        in_specs=[
            pl.BlockSpec(memory_space=pltpu.MemorySpace.SMEM),             # var
            pl.BlockSpec((A, TN, tk), lambda nb, kb: (0, nb, kb)),          # Jx tile
            pl.BlockSpec((A, TN, Mp), lambda nb, kb: (0, nb, 0)),           # G (resident over kb)
            pl.BlockSpec((Mp, Mp), lambda nb, kb: (0, 0)),                  # var^2 * A (resident)
        ],
        out_specs=pl.BlockSpec((A * A, TN), lambda nb, kb: (0, nb)),        # lane-dense
        scratch_shapes=[pltpu.VMEM((A * A, TN), jnp.float32)],
        compiler_params=pltpu.CompilerParams(
            dimension_semantics=("parallel", "arbitrary"),
            vmem_limit_bytes=_VMEM_LIMIT),
    )(var_arr, Jx3, G3, A_scaled)


# ---------------------------- model definition ------------------------------

def mlp_apply_flat(flat, x, D, H, O):
    """Same MLP as the Pallas forward kernel, on a flat parameter vector
    (used only to take jacobians w.r.t. parameters, mirroring BackPackInterface)."""
    i = 0
    W1 = flat[i:i + D * H].reshape(D, H); i += D * H
    b1 = flat[i:i + H]; i += H
    W2 = flat[i:i + H * O].reshape(H, O); i += H * O
    b2 = flat[i:i + O]
    h = jnp.tanh(x @ W1 + b1)
    return h @ W2 + b2


class VaLLAPallas:
    """JAX/Pallas re-implementation of VaLLA.forward() (regression likelihood)."""

    def __init__(self, params, inducing_locations, inducing_classes,
                 prior_precision, D, H, O):
        self.params = params
        self.D, self.H, self.O = D, H, O
        self.inducing_locations = inducing_locations
        self.inducing_classes = inducing_classes
        self.num_inducing = inducing_locations.shape[0]
        self.log_prior_precision = jnp.log(
            jnp.asarray(prior_precision, jnp.float32))
        # L initialised exactly as in torch: tril entries of the identity.
        li, lj = jnp.tril_indices(self.num_inducing)
        self.tril_i, self.tril_j = li, lj
        self.L_vec = jnp.eye(self.num_inducing, dtype=jnp.float32)[li, lj]

    def _flat_params(self):
        p = self.params
        return jnp.concatenate([p["W1"].reshape(-1), p["b1"].reshape(-1),
                                p["W2"].reshape(-1), p["b2"].reshape(-1)])

    def forward(self, X):
        p = self.params
        # F_mean = model(X)   (Pallas kernel, batch-tiled)
        F_mean = mlp_forward_pallas(X, p["W1"], p["b1"], p["W2"], p["b2"])

        # Per-sample jacobians w.r.t. flattened parameters (glue: autodiff).
        flat = self._flat_params()
        jac_fn = jax.vmap(jax.jacrev(mlp_apply_flat, argnums=0),
                          in_axes=(None, 0, None, None, None))
        Jx = jac_fn(flat, X, self.D, self.H, self.O)                       # (N, A, P)
        Jz = jac_fn(flat, self.inducing_locations,
                    self.D, self.H, self.O)[
            jnp.arange(self.num_inducing), self.inducing_classes]          # (M, P)

        var = 1.0 / jnp.exp(self.log_prior_precision)

        N, A, P = Jx.shape
        M = self.num_inducing
        TN = 128                                   # samples per Fvar grid step
        Pp = _round_up(P, 128)
        Mp = _round_up(M, 128)
        Np = _round_up(N, TN)

        # Channel-major, zero-padded layout (A, Np, Pp): leading-axis indexing
        # in the Fvar kernel yields dense (TN, tk) tiles, and a free reshape to
        # (A*Np, Pp) feeds the MXU matmul — no duplicate HBM copy.
        Jx_cm = jnp.zeros((A, Np, Pp), jnp.float32).at[:, :N, :P].set(
            jnp.transpose(Jx, (1, 0, 2)))
        Jz_pad = jnp.zeros((Mp, Pp), jnp.float32).at[:M, :P].set(Jz)
        JzT_pad = Jz_pad.T                          # (Pp, Mp): natural MXU form

        # Kzz = var * Jz Jz^T   (tiled MXU matmul, var fused into the epilogue)
        Kzz = matmul_pallas(Jz_pad, JzT_pad, scale=var)[:M, :M]

        # compute_inducing_term: H = I + L^T Kzz L ;  A = L solve(H, L^T)
        Lmat = jnp.eye(M, dtype=jnp.float32).at[self.tril_i, self.tril_j].set(self.L_vec)
        eye = jnp.eye(M, dtype=jnp.float32)
        Hmat = eye + Lmat.T @ Kzz @ Lmat
        # TODO(synk): dense M x M linear solve (torch.linalg.solve) has no clean Pallas equivalent; kept in plain JAX.
        Amat = Lmat @ jnp.linalg.solve(Hmat, Lmat.T)
        # Fold var^2 into A once; padded rows/cols stay exactly zero so the
        # padded G columns contribute nothing to the quadratic term.
        A_scaled = jnp.zeros((Mp, Mp), jnp.float32).at[:M, :M].set((var * var) * Amat)

        # G = Jx Jz^T flattened to (A*Np, Mp): one big MXU-bound matmul over P.
        # Hq = G (var^2 A) is fused into the Fvar kernel epilogue (no extra call).
        G_flat = matmul_pallas(Jx_cm.reshape(A * Np, Pp), JzT_pad, scale=1.0)   # (A*Np, Mp)

        # Fvar = var * Jx Jx^T - blockdiag(G (var^2 A) G^T)  (lane-dense kernel)
        Fvar_lane = fvar_pallas(var, Jx_cm, G_flat.reshape(A, Np, Mp), A_scaled)  # (A*A, Np)
        Fvar = jnp.transpose(Fvar_lane.reshape(A, A, Np), (2, 0, 1))[:N]          # (N, A, A)
        # Symmetrize (exact up to rounding) so downstream Choleskys are safe.
        Fvar = 0.5 * (Fvar + jnp.swapaxes(Fvar, -1, -2))
        return F_mean, Fvar


# ---------------------------------- main -------------------------------------

if __name__ == "__main__":
    key = jax.random.PRNGKey(0)
    N, D, Hdim, O, M = 8, 4, 32, 2, 16
    k1, k2, k3, k4, k5, k6 = jax.random.split(key, 6)

    params = {
        "W1": 0.3 * jax.random.normal(k1, (D, Hdim), jnp.float32),
        "b1": 0.1 * jax.random.normal(k2, (Hdim,), jnp.float32),
        "W2": 0.3 * jax.random.normal(k3, (Hdim, O), jnp.float32),
        "b2": 0.1 * jax.random.normal(k4, (O,), jnp.float32),
    }
    X = jax.random.normal(k5, (N, D), jnp.float32)
    Z = jax.random.normal(k6, (M, D), jnp.float32)
    inducing_classes = jnp.zeros((M,), jnp.int32)   # regression likelihood

    model = VaLLAPallas(params, Z, inducing_classes,
                        prior_precision=2.0, D=D, H=Hdim, O=O)
    F_mean, F_var = model.forward(X)
    jax.block_until_ready((F_mean, F_var))

    # ---------------- pure-JAX reference (mirrors torch forward) ----------------
    flat = model._flat_params()
    jac_fn = jax.vmap(jax.jacrev(mlp_apply_flat, argnums=0),
                      in_axes=(None, 0, None, None, None))
    Jx = jac_fn(flat, X, D, Hdim, O)
    Jz = jac_fn(flat, Z, D, Hdim, O)[jnp.arange(M), inducing_classes]
    var = 1.0 / jnp.exp(model.log_prior_precision)
    Kx_diag = var * jnp.einsum('nai,nbi->nab', Jx, Jx)
    Kxz = var * jnp.einsum('nai,mi->nma', Jx, Jz)
    Kzz = var * jnp.einsum('mi,ni->mn', Jz, Jz)
    Lmat = jnp.eye(M, dtype=jnp.float32).at[model.tril_i, model.tril_j].set(model.L_vec)
    Hmat = jnp.eye(M, dtype=jnp.float32) + jnp.einsum('mn,ml,lk->nk', Lmat, Kzz, Lmat)
    Amat = Lmat @ jnp.linalg.solve(Hmat, Lmat.T)
    Fvar_ref = Kx_diag - jnp.einsum('nma,ml,nlb->nab', Kxz, Amat, Kxz)
    Fmean_ref = jnp.tanh(X @ params["W1"] + params["b1"]) @ params["W2"] + params["b2"]

    assert F_mean.shape == (N, O) and F_var.shape == (N, O, O)
    assert jnp.allclose(F_mean, Fmean_ref, rtol=1e-4, atol=1e-5)
    assert jnp.allclose(F_var, Fvar_ref, rtol=1e-3, atol=1e-4)
    print("KERNEL_OK")
</pallas_src>

<mosaic_0001>
module attributes {stable_mosaic.version = 11 : i64} {
  func.func @_mlp_forward_kernel(%arg0: i32, %arg1: memref<8x4xf32, #tpu.memory_space<vmem>>, %arg2: memref<4x32xf32, #tpu.memory_space<vmem>>, %arg3: memref<1x32xf32, #tpu.memory_space<vmem>>, %arg4: memref<32x2xf32, #tpu.memory_space<vmem>>, %arg5: memref<1x2xf32, #tpu.memory_space<vmem>>, %arg6: memref<8x2xf32, #tpu.memory_space<vmem>>) attributes {dimension_semantics = [#tpu.dimension_semantics<parallel>], iteration_bounds = array<i64: 1>, scalar_prefetch = 0 : i64, scratch_operands = 0 : i64, tpu.core_type = #tpu.core_type<tc>, window_params = [{transform_indices = @transform_0, window_bounds = array<i64: 8, 4>}, {pipeline_mode = #tpu.pipeline_mode<synchronous>, transform_indices = @transform_1, window_bounds = array<i64: 4, 32>}, {pipeline_mode = #tpu.pipeline_mode<synchronous>, transform_indices = @transform_2, window_bounds = array<i64: 1, 32>}, {pipeline_mode = #tpu.pipeline_mode<synchronous>, transform_indices = @transform_3, window_bounds = array<i64: 32, 2>}, {pipeline_mode = #tpu.pipeline_mode<synchronous>, transform_indices = @transform_4, window_bounds = array<i64: 1, 2>}, {transform_indices = @transform_5, window_bounds = array<i64: 8, 2>}]} {
    %c0 = arith.constant 0 : index
    %c0_0 = arith.constant 0 : index
    %0 = vector.load %arg1[%c0, %c0_0] : memref<8x4xf32, #tpu.memory_space<vmem>>, vector<8x4xf32>
    %c0_1 = arith.constant 0 : index
    %c0_2 = arith.constant 0 : index
    %1 = vector.load %arg2[%c0_1, %c0_2] : memref<4x32xf32, #tpu.memory_space<vmem>>, vector<4x32xf32>
    %cst = arith.constant dense<0.000000e+00> : vector<8x32xf32>
    %2 = tpu.matmul %0, %1, %cst {dimension_numbers = #tpu.dot_dimension_numbers<[1], [0], [0], [1], [0, 0, 1, 1], [], []>} : vector<8x4xf32>, vector<4x32xf32>, vector<8x32xf32> -> vector<8x32xf32>
    %c0_3 = arith.constant 0 : index
    %c0_4 = arith.constant 0 : index
    %3 = vector.load %arg3[%c0_3, %c0_4] : memref<1x32xf32, #tpu.memory_space<vmem>>, vector<1x32xf32>
    %4 = vector.broadcast %3 : vector<1x32xf32> to vector<8x32xf32>
    %5 = arith.addf %2, %4 : vector<8x32xf32>
    %6 = math.tanh %5 : vector<8x32xf32>
    %c0_5 = arith.constant 0 : index
    %c0_6 = arith.constant 0 : index
    %7 = vector.load %arg4[%c0_5, %c0_6] : memref<32x2xf32, #tpu.memory_space<vmem>>, vector<32x2xf32>
    %cst_7 = arith.constant dense<0.000000e+00> : vector<8x2xf32>
    %8 = tpu.matmul %6, %7, %cst_7 {dimension_numbers = #tpu.dot_dimension_numbers<[1], [0], [0], [1], [0, 0, 1, 1], [], []>} : vector<8x32xf32>, vector<32x2xf32>, vector<8x2xf32> -> vector<8x2xf32>
    %c0_8 = arith.constant 0 : index
    %c0_9 = arith.constant 0 : index
    %9 = vector.load %arg5[%c0_8, %c0_9] : memref<1x2xf32, #tpu.memory_space<vmem>>, vector<1x2xf32>
    %10 = vector.broadcast %9 : vector<1x2xf32> to vector<8x2xf32>
    %11 = arith.addf %8, %10 : vector<8x2xf32>
    %c0_10 = arith.constant 0 : index
    %c0_11 = arith.constant 0 : index
    %12 = vector.load %arg6[%c0_10, %c0_11] : memref<8x2xf32, #tpu.memory_space<vmem>>, vector<8x2xf32>
    tpu.vector_store %arg6[%c0_10, %c0_11], %11 {strides = array<i32>} : memref<8x2xf32, #tpu.memory_space<vmem>>, vector<8x2xf32>,
    return
  }
  func.func @transform_0(%arg0: i32) -> (i32, i32) {
    %c0_i32 = arith.constant 0 : i32
    %c0_i32_0 = arith.constant 0 : i32
    return %arg0, %c0_i32 : i32, i32
  }
  func.func @transform_1(%arg0: i32) -> (i32, i32) {
    %c0_i32 = arith.constant 0 : i32
    %c0_i32_0 = arith.constant 0 : i32
    %c0_i32_1 = arith.constant 0 : i32
    return %c0_i32, %c0_i32_0 : i32, i32
  }
  func.func @transform_2(%arg0: i32) -> (i32, i32) {
    %c0_i32 = arith.constant 0 : i32
    %c0_i32_0 = arith.constant 0 : i32
    %c0_i32_1 = arith.constant 0 : i32
    return %c0_i32, %c0_i32_0 : i32, i32
  }
  func.func @transform_3(%arg0: i32) -> (i32, i32) {
    %c0_i32 = arith.constant 0 : i32
    %c0_i32_0 = arith.constant 0 : i32
    %c0_i32_1 = arith.constant 0 : i32
    return %c0_i32, %c0_i32_0 : i32, i32
  }
  func.func @transform_4(%arg0: i32) -> (i32, i32) {
    %c0_i32 = arith.constant 0 : i32
    %c0_i32_0 = arith.constant 0 : i32
    %c0_i32_1 = arith.constant 0 : i32
    return %c0_i32, %c0_i32_0 : i32, i32
  }
  func.func @transform_5(%arg0: i32) -> (i32, i32) {
    %c0_i32 = arith.constant 0 : i32
    %c0_i32_0 = arith.constant 0 : i32
    return %arg0, %c0_i32 : i32, i32
  }
}

</mosaic_0001>

<llo_original>
// kernel: tpu_custom_call.1
$region0: #{tpu_custom_call.1}
  #allocation0 [shape = 'u32[]', space=smem, size = 0x4, offset = 0x4, fixed_abs, tag = 'smem constant byte address 0x4 - core index']
  #allocation1 [shape = 'u32[144,128]{1,0:T(1,128)}', space=vmem, size = 0x12000, scoped, tag = 'internal scratch']
  %s0 = inlined_call_operand.vmem [shape: f32[8,4], index: 0, kind: input, shape index: {}]
  %s1 = inlined_call_operand.vmem [shape: f32[4,32], index: 1, kind: input, shape index: {}]
  %s2 = inlined_call_operand.vmem [shape: f32[1,32], index: 2, kind: input, shape index: {}]
  %s3 = inlined_call_operand.vmem [shape: f32[32,2], index: 3, kind: input, shape index: {}]
  %s4 = inlined_call_operand.vmem [shape: f32[1,2], index: 4, kind: input, shape index: {}]
  %s5 = inlined_call_operand.vmem [shape: f32[8,2], index: 5, kind: output, shape index: {}]
  %s6 = sld [smem:[#allocation0]]
  $region30: #{tpu_custom_call.1} parent=0
    _
  %s8 = ssub.s32 1, %s6
  %s9 = scalar_select 0, %s8, %s6
  // Predicated region
  $region2: #{tpu_custom_call.1} parent=0 // pred_check
    _
  $region3: #{tpu_custom_call.1} parent=0 // pred_check_branch
    %11 = sbr.rel (0) target = $region5
  $region4: #{tpu_custom_call.1} parent=0 // pred_region
    _
  $region5: #{tpu_custom_call.1} parent=0 // pred_fallthru
    _
  // Predicated region
  $region6: #{tpu_custom_call.1} parent=0 // pred_check
    _
  $region7: #{tpu_custom_call.1} parent=0 // pred_check_branch
    %13 = sbr.rel (0) target = $region9
  $region8: #{tpu_custom_call.1} parent=0 // pred_region
    _
  $region9: #{tpu_custom_call.1} parent=0 // pred_fallthru
    _
  // Predicated region
  $region10: #{tpu_custom_call.1} parent=0 // pred_check
    _
  $region11: #{tpu_custom_call.1} parent=0 // pred_check_branch
    %15 = sbr.rel (0) target = $region13
  $region12: #{tpu_custom_call.1} parent=0 // pred_region
    _
  $region13: #{tpu_custom_call.1} parent=0 // pred_fallthru
    _
  // Predicated region
  $region14: #{tpu_custom_call.1} parent=0 // pred_check
    _
  $region15: #{tpu_custom_call.1} parent=0 // pred_check_branch
    %17 = sbr.rel (0) target = $region17
  $region16: #{tpu_custom_call.1} parent=0 // pred_region
    _
  $region17: #{tpu_custom_call.1} parent=0 // pred_fallthru
    _
  // Predicated region
  $region18: #{tpu_custom_call.1} parent=0 // pred_check
    _
  $region19: #{tpu_custom_call.1} parent=0 // pred_check_branch
    %19 = sbr.rel (0) target = $region21
  $region20: #{tpu_custom_call.1} parent=0 // pred_region
    _
  $region21: #{tpu_custom_call.1} parent=0 // pred_fallthru
    _
  %v20 = vld [vmem:[%s0] sm:$0xff]
  %v21 = vld [vmem:[%s1] sm:$0xf]
  %v22 = vld [vmem:[%s2] sm:$0x1]
  %v24 = vlaneseq
  %v25 = vshrl.u32 %v24, 7
  %v26 = vsub.s32 0, %v25
  %v27 = vrot.slane %v22, %v26
  %vm29 = vcmask 31744
  %v31 = vsel %vm29, %v20, 0
  %vm33 = vcmask 1043456
  %v35 = vsel %vm33, %v21, 0
  %37 = vmatprep.subr.mxu0 0.0
  %38 = vmatpush1.msra.mxu0 %v35
  %39 = vmatprep.subr.mxu0 0.0
  %40 = vmatpush1.msra.mxu0 0.0
  %41 = vmatprep.subr.mxu0 0.0
  %42 = vmatpush1.msra.mxu0 0.0
  %43 = vmatprep.subr.mxu0 0.0
  %44 = vmatpush1.msra.mxu0 0.0
  %45 = vmatprep.subr.mxu0 0.0
  %46 = vmatpush1.msra.mxu0 0.0
  %47 = vmatprep.subr.mxu0 0.0
  %48 = vmatpush1.msra.mxu0 0.0
  %49 = vmatprep.subr.mxu0 0.0
  %50 = vmatpush1.msra.mxu0 0.0
  %51 = vmatprep.subr.mxu0 0.0
  %52 = vmatpush1.msra.mxu0 0.0
  %53 = vmatprep.subr.mxu0 0.0
  %54 = vmatpush1.msra.mxu0 0.0
  %55 = vmatprep.subr.mxu0 0.0
  %56 = vmatpush1.msra.mxu0 0.0
  %57 = vmatprep.subr.mxu0 0.0
  %58 = vmatpush1.msra.mxu0 0.0
  %59 = vmatprep.subr.mxu0 0.0
  %60 = vmatpush1.msra.mxu0 0.0
  %61 = vmatprep.subr.mxu0 0.0
  %62 = vmatpush1.msra.mxu0 0.0
  %63 = vmatprep.subr.mxu0 0.0
  %64 = vmatpush1.msra.mxu0 0.0
  %65 = vmatprep.subr.mxu0 0.0
  %66 = vmatpush1.msra.mxu0 0.0
  %67 = vmatprep.subr.mxu0 0.0
  %68 = vmatpush1.msra.mxu0 0.0
  %69 = vmatprep.subr.mxu0 0.0
  %70 = vmatpush1.msra.mxu0 0.0
  %71 = vmatprep.subr.mxu0 0.0
  %72 = vmatpush1.msra.mxu0 0.0
  %73 = vmatprep.subr.mxu0 0.0
  %74 = vmatpush1.msra.mxu0 0.0
  %75 = vmatprep.subr.mxu0 0.0
  %76 = vmatpush1.msra.mxu0 0.0
  %77 = vmatprep.subr.mxu0 0.0
  %78 = vmatpush1.msra.mxu0 0.0
  %79 = vmatprep.subr.mxu0 0.0
  %80 = vmatpush1.msra.mxu0 0.0
  %81 = vmatprep.subr.mxu0 0.0
  %82 = vmatpush1.msra.mxu0 0.0
  %83 = vmatprep.subr.mxu0 0.0
  %84 = vmatpush1.msra.mxu0 0.0
  %85 = vmatprep.subr.mxu0 0.0
  %86 = vmatpush1.msra.mxu0 0.0
  %87 = vmatprep.subr.mxu0 0.0
  %88 = vmatpush1.msra.mxu0 0.0
  %89 = vmatprep.subr.mxu0 0.0
  %90 = vmatpush1.msra.mxu0 0.0
  %91 = vmatprep.subr.mxu0 0.0
  %92 = vmatpush1.msra.mxu0 0.0
  %93 = vmatprep.subr.mxu0 0.0
  %94 = vmatpush1.msra.mxu0 0.0
  %95 = vmatprep.subr.mxu0 0.0
  %96 = vmatpush1.msra.mxu0 0.0
  %97 = vmatprep.subr.mxu0 0.0
  %98 = vmatpush1.msra.mxu0 0.0
  %99 = vmatprep.subr.mxu0 0.0
  %100 = vmatpush1.msra.mxu0 0.0
  %101 = vmatprep.mubr.f32.mxu0 0.0
  %102 = vmatmul.mubr.f32.gmra.mrb[0].mxu0 %v31
  %v103 = vpop.f32.mrb[0].mxu0
  %v104 = vadd.f32 %v27, %v103
  %v105 = vpop.f32.mrb[0].mxu0
  %106 = vdwg.mxu0
  %v107 = vtanh.pop %v104
  %v108 = vld [vmem:[%s3] sm:$0xff]
  %v109 = vld [vmem:[%s3 + $0x8] sm:$0xff]
  %v110 = vld [vmem:[%s3 + $0x10] sm:$0xff]
  %v111 = vld [vmem:[%s3 + $0x18] sm:$0xff]
  %v112 = vld [vmem:[%s4] sm:$0x1]
  %v114 = vlaneseq
  %v115 = vshrl.u32 %v114, 7
  %v116 = vsub.s32 0, %v115
  %v117 = vrot.slane %v112, %v116
  %vm119 = vcmask 261120
  %v121 = vsel %vm119, %v107, 0
  %123 = vmatprep.subr.mxu0 0.0
  %124 = vmatpush1.msra.mxu0 %v108
  %125 = vmatprep.subr.mxu0 0.0
  %126 = vmatpush1.msra.mxu0 %v109
  %127 = vmatprep.subr.mxu0 0.0
  %128 = vmatpush1.msra.mxu0 %v110
  %129 = vmatprep.subr.mxu0 0.0
  %130 = vmatpush1.msra.mxu0 %v111
  %131 = vmatprep.subr.mxu0 0.0
  %132 = vmatpush1.msra.mxu0 0.0
  %133 = vmatprep.subr.mxu0 0.0
  %134 = vmatpush1.msra.mxu0 0.0
  %135 = vmatprep.subr.mxu0 0.0
  %136 = vmatpush1.msra.mxu0 0.0
  %137 = vmatprep.subr.mxu0 0.0
  %138 = vmatpush1.msra.mxu0 0.0
  %139 = vmatprep.subr.mxu0 0.0
  %140 = vmatpush1.msra.mxu0 0.0
  %141 = vmatprep.subr.mxu0 0.0
  %142 = vmatpush1.msra.mxu0 0.0
  %143 = vmatprep.subr.mxu0 0.0
  %144 = vmatpush1.msra.mxu0 0.0
  %145 = vmatprep.subr.mxu0 0.0
  %146 = vmatpush1.msra.mxu0 0.0
  %147 = vmatprep.subr.mxu0 0.0
  %148 = vmatpush1.msra.mxu0 0.0
  %149 = vmatprep.subr.mxu0 0.0
  %150 = vmatpush1.msra.mxu0 0.0
  %151 = vmatprep.subr.mxu0 0.0
  %152 = vmatpush1.msra.mxu0 0.0
  %153 = vmatprep.subr.mxu0 0.0
  %154 = vmatpush1.msra.mxu0 0.0
  %155 = vmatprep.subr.mxu0 0.0
  %156 = vmatpush1.msra.mxu0 0.0
  %157 = vmatprep.subr.mxu0 0.0
  %158 = vmatpush1.msra.mxu0 0.0
  %159 = vmatprep.subr.mxu0 0.0
  %160 = vmatpush1.msra.mxu0 0.0
  %161 = vmatprep.subr.mxu0 0.0
  %162 = vmatpush1.msra.mxu0 0.0
  %163 = vmatprep.subr.mxu0 0.0
  %164 = vmatpush1.msra.mxu0 0.0
  %165 = vmatprep.subr.mxu0 0.0
  %166 = vmatpush1.msra.mxu0 0.0
  %167 = vmatprep.subr.mxu0 0.0
  %168 = vmatpush1.msra.mxu0 0.0
  %169 = vmatprep.subr.mxu0 0.0
  %170 = vmatpush1.msra.mxu0 0.0
  %171 = vmatprep.subr.mxu0 0.0
  %172 = vmatpush1.msra.mxu0 0.0
  %173 = vmatprep.subr.mxu0 0.0
  %174 = vmatpush1.msra.mxu0 0.0
  %175 = vmatprep.subr.mxu0 0.0
  %176 = vmatpush1.msra.mxu0 0.0
  %177 = vmatprep.subr.mxu0 0.0
  %178 = vmatpush1.msra.mxu0 0.0
  %179 = vmatprep.subr.mxu0 0.0
  %180 = vmatpush1.msra.mxu0 0.0
  %181 = vmatprep.subr.mxu0 0.0
  %182 = vmatpush1.msra.mxu0 0.0
  %183 = vmatprep.subr.mxu0 0.0
  %184 = vmatpush1.msra.mxu0 0.0
  %185 = vmatprep.subr.mxu0 0.0
  %186 = vmatpush1.msra.mxu0 0.0
  %187 = vmatprep.mubr.f32.mxu0 0.0
  %188 = vmatmul.mubr.f32.gmra.mrb[0].mxu0 %v121
  %v189 = vpop.f32.mrb[0].mxu0
  %v190 = vadd.f32 %v117, %v189
  %v191 = vpop.f32.mrb[0].mxu0
  %192 = vdwg.mxu0
  %vm193 = vcmask 15360
  %194 = vst.msk [vmem:[%s5] sm:$0xff] %vm193, %v190
  // Predicated region
  $region22: #{tpu_custom_call.1} parent=0 // pred_check
    _
  $region23: #{tpu_custom_call.1} parent=0 // pred_check_branch
    %196 = sbr.rel (0) target = $region25
  $region24: #{tpu_custom_call.1} parent=0 // pred_region
    _
  $region25: #{tpu_custom_call.1} parent=0 // pred_fallthru
    _
  // Predicated region
  $region26: #{tpu_custom_call.1} parent=0 // pred_check
    _
  $region27: #{tpu_custom_call.1} parent=0 // pred_check_branch
    %198 = sbr.rel (0) target = $region29
  $region28: #{tpu_custom_call.1} parent=0 // pred_region
    _
  $region29: #{tpu_custom_call.1} parent=0 // pred_fallthru
    _

</llo_original>
